<compile_context>
chip_gen: v6e
topology: v6e:2x2x1
jax: 0.10.0
libtpu: 0.0.40
codegen_flags: <defaults>
</compile_context>

<pallas_src>
import functools

import jax
import jax.numpy as jnp
from jax import lax
from jax.experimental import pallas as pl
from jax.experimental.pallas import tpu as pltpu

_NEG_INF = float("-inf")


def _round_up(x, m):
    return ((x + m - 1) // m) * m


# ----------------------------------------------------------------------------
# Kernel 1: fused q/k/v 1x1-conv projections + CAM channel attention matrix.
# Grid: (B, HW/Ts) with the spatial axis last and 'arbitrary' (energy accum).
# ----------------------------------------------------------------------------
def _proj_cam_kernel(w_ref, b_ref, x_ref, q_ref, kt_ref, v_ref, att_ref,
                     energy_sc, *, c8):
    si = pl.program_id(1)

    @pl.when(si == 0)
    def _():
        energy_sc[...] = jnp.zeros_like(energy_sc)

    xf = x_ref[0]                                            # (C, Ts) f32
    xb = xf.astype(jnp.bfloat16)

    # One fused channel-mixing matmul for q, k, v (bf16 MXU, f32 accumulate).
    fused = jnp.dot(w_ref[...], xb, preferred_element_type=jnp.float32)
    fused = fused + b_ref[...]
    q_ref[0] = fused[0:c8].astype(jnp.bfloat16)              # (C8, Ts) lane-dense
    # k is stored pre-transposed (Ts, C8) so the PAM score matmul is a
    # canonical (Tk, C8) @ (C8, Tq) MXU op with no per-step relayout.
    kt_ref[0] = fused[c8:2 * c8].T.astype(jnp.bfloat16)      # (Ts, C8)
    v_ref[0] = fused[2 * c8:].astype(jnp.bfloat16)           # (C, Ts) lane-dense

    # CAM channel-energy accumulation over spatial tiles.  Kept in f32 for
    # accuracy (bf16 energy shifts the CAM softmax logits by O(0.1)).
    # TODO(synk): optionally bf16 this matmul on v5e for extra MXU throughput.
    energy_sc[...] += lax.dot_general(
        xf, xf, (((1,), (1,)), ((), ())), preferred_element_type=jnp.float32)

    @pl.when(si == pl.num_programs(1) - 1)
    def _():
        energy = energy_sc[...]                              # (C, C)
        energy_new = jnp.max(energy, axis=-1, keepdims=True) - energy
        e = jnp.exp(energy_new - jnp.max(energy_new, axis=-1, keepdims=True))
        # Exact normalization: only a (C, 1) divide per row, negligible cost.
        att_ref[0] = e / jnp.sum(e, axis=-1, keepdims=True)


# ----------------------------------------------------------------------------
# Kernel 2: flash-style PAM with the CAM application + residuals fused into
# the finalize.  Grid: (B, HW/Tq, HW/Tk), Tk last and 'arbitrary'.
# ----------------------------------------------------------------------------
def _pam_kernel(g_ref, q_ref, kt_ref, v_ref, x_ref, att_ref, o_ref,
                m_sc, l_sc, acc_sc, *, tk, hw_valid, needs_mask, exp_dtype):
    ki = pl.program_id(2)

    @pl.when(ki == 0)
    def _():
        m_sc[...] = jnp.full_like(m_sc, _NEG_INF)
        l_sc[...] = jnp.zeros_like(l_sc)
        acc_sc[...] = jnp.zeros_like(acc_sc)

    # scores s[j, i] = k_j . q_i  -> (Tk, Tq); canonical (Tk, C8) @ (C8, Tq).
    s = jnp.dot(kt_ref[0], q_ref[0], preferred_element_type=jnp.float32)

    if needs_mask:
        # Mask zero-padded key positions (static no-op when HW is aligned).
        j = ki * tk + lax.broadcasted_iota(jnp.int32, s.shape, 0)
        s = jnp.where(j < hw_valid, s, _NEG_INF)

    m_prev = m_sc[...]                                       # (1, Tq)
    m_new = jnp.maximum(m_prev, jnp.max(s, axis=0, keepdims=True))
    alpha = jnp.exp(m_prev - m_new)                          # (1, Tq)
    # exp in bf16 on chips with a bf16 EUP (v6e/v7x); f32 otherwise (v5e).
    p = jnp.exp((s - m_new).astype(exp_dtype))               # (Tk, Tq)
    l_sc[...] = alpha * l_sc[...] + jnp.sum(p.astype(jnp.float32), axis=0,
                                            keepdims=True)
    # acc[c, i] += sum_j v[c, j] p[j, i]  -> canonical (C, Tk) @ (Tk, Tq);
    # accumulator is already (C, Tq) so the finalize needs no transpose.
    acc_sc[...] = alpha * acc_sc[...] + jnp.dot(
        v_ref[0], p.astype(jnp.bfloat16), preferred_element_type=jnp.float32)
    m_sc[...] = m_new

    @pl.when(ki == pl.num_programs(2) - 1)
    def _():
        xf = x_ref[0]                                        # (C, Tq) f32
        # Deferred softmax normalization (one (C, Tq) scale).
        pam = acc_sc[...] * pl.reciprocal(l_sc[...], approx=True)
        # CAM applied on the fly: small (C, C) @ (C, Tq) matmul -> no
        # (B, C, HW) cam round trip through HBM.
        cam = jnp.dot(att_ref[0].astype(jnp.bfloat16), xf.astype(jnp.bfloat16),
                      preferred_element_type=jnp.float32)    # (C, Tq)
        # DualAttention sum: (gp*PAM + x) + (gc*CAM + x).
        o_ref[0] = g_ref[0] * pam + g_ref[1] * cam + 2.0 * xf


# ----------------------------------------------------------------------------
# Wrapper helpers
# ----------------------------------------------------------------------------
def _bf16_exp_supported():
    """v6e / v7x have a bf16 EUP; older chips (v2-v5) do not."""
    try:
        kind = jax.devices()[0].device_kind.lower()
    except Exception:
        return True
    return not any(tag in kind for tag in ("v2", "v3", "v4", "v5"))


def _vmem_limit(nbytes):
    """Scoped-VMEM limit from the actual tile working set with headroom.

    Never hands the compiler the full physical capacity (v7x has only 64 MiB
    physical VMEM); on v5e/v6e (128 MiB) limits above 64 MiB are legitimate.
    """
    try:
        physical = pltpu.get_tpu_info().vmem_capacity_bytes
    except Exception:
        physical = 64 * 2**20          # conservative (v7x-sized) fallback
    cap = physical - 12 * 2**20        # headroom for compiler temporaries/DMA
    return int(min(max(32 * 2**20, 2 * nbytes), cap))


def _choose_tiles(hw, batch):
    """Returns (tq, tk, ts_proj, hw_pad)."""
    if hw <= 1024:
        tq = tk = ts = hw
        # Keep >= 2 (b, qi) work items so the 'parallel' axes can shard
        # across v7x's two TensorCores even at batch 1.
        if batch == 1 and hw >= 512 and hw % 256 == 0:
            tq = hw // 2
        return tq, tk, ts, hw
    tk = 512 if hw >= 2048 else 256
    hw_pad = _round_up(hw, tk)
    # Bigger q tiles cut K/V re-streaming from HBM; keep at least 2 work items.
    tq = tk
    for cand in (1024, 512, 256):
        if cand >= tk and hw_pad % cand == 0 and batch * (hw_pad // cand) >= 2:
            tq = cand
            break
    return tq, tk, tk, hw_pad


def _buffered_spec(block_shape, index_map, depth):
    """Triple-buffer streamed operands when pipeline_mode is available."""
    try:
        return pl.BlockSpec(block_shape, index_map,
                            pipeline_mode=pl.Buffered(depth))
    except Exception:
        return pl.BlockSpec(block_shape, index_map)


# ----------------------------------------------------------------------------
# Wrapper
# ----------------------------------------------------------------------------
def dual_attention(x_nchw, params):
    """x_nchw: (B, C, H, W) float32.  Returns (B, C, H, W) float32."""
    B, C, H, W = x_nchw.shape
    HW = H * W
    C8 = C // 8
    cproj = 2 * C8 + C
    x = x_nchw.reshape(B, C, HW).astype(jnp.float32)

    tq, tk, ts, hw_pad = _choose_tiles(HW, B)
    needs_mask = hw_pad != HW
    x_p = jnp.pad(x, ((0, 0), (0, 0), (0, hw_pad - HW))) if needs_mask else x

    w_all = jnp.concatenate([params["wq"], params["wk"], params["wv"]],
                            axis=0).astype(jnp.bfloat16)      # (cproj, C)
    b_all = jnp.concatenate([params["bq"], params["bk"], params["bv"]],
                            axis=0).astype(jnp.float32)       # (cproj, 1)
    gammas = jnp.concatenate([params["gamma_pam"].reshape(1),
                              params["gamma_cam"].reshape(1)]
                             ).astype(jnp.float32)            # (2,)

    # ---------------- fused q/k/v projection + CAM attention matrix ----------
    n_s = hw_pad // ts
    proj_bytes = (2 * C * ts * 4 + cproj * C * 2 + cproj * 4
                  + 2 * (2 * C8 * ts + C * ts) * 2
                  + 3 * C * C * 4 + 3 * cproj * ts * 4)
    q_p, k_t, v_p, att = pl.pallas_call(
        functools.partial(_proj_cam_kernel, c8=C8),
        out_shape=(
            jax.ShapeDtypeStruct((B, C8, hw_pad), jnp.bfloat16),   # q (C8, HW)
            jax.ShapeDtypeStruct((B, hw_pad, C8), jnp.bfloat16),   # k^T (HW, C8)
            jax.ShapeDtypeStruct((B, C, hw_pad), jnp.bfloat16),    # v (C, HW)
            jax.ShapeDtypeStruct((B, C, C), jnp.float32),          # CAM att
        ),
        grid_spec=pltpu.PrefetchScalarGridSpec(
            num_scalar_prefetch=0,
            grid=(B, n_s),
            in_specs=[
                pl.BlockSpec((cproj, C), lambda b, s: (0, 0)),
                pl.BlockSpec((cproj, 1), lambda b, s: (0, 0)),
                pl.BlockSpec((1, C, ts), lambda b, s: (b, 0, s)),
            ],
            out_specs=[
                pl.BlockSpec((1, C8, ts), lambda b, s: (b, 0, s)),
                pl.BlockSpec((1, ts, C8), lambda b, s: (b, s, 0)),
                pl.BlockSpec((1, C, ts), lambda b, s: (b, 0, s)),
                pl.BlockSpec((1, C, C), lambda b, s: (b, 0, 0)),
            ],
            scratch_shapes=[pltpu.VMEM((C, C), jnp.float32)],   # CAM energy acc
        ),
        compiler_params=pltpu.CompilerParams(
            dimension_semantics=("parallel", "arbitrary"),
            vmem_limit_bytes=_vmem_limit(proj_bytes)),
    )(w_all, b_all, x_p)

    # ---------------- PAM flash attention + fused CAM apply / residuals ------
    n_q = hw_pad // tq
    n_k = hw_pad // tk
    exp_dtype = jnp.bfloat16 if _bf16_exp_supported() else jnp.float32
    pam_bytes = (2 * C8 * tq * 2 + 3 * tk * C8 * 2 + 3 * C * tk * 2
                 + 2 * C * tq * 4 + 2 * C * C * 4 + 2 * C * tq * 4
                 + C * tq * 4 + 2 * tq * 4 + 4 * tk * tq * 4)

    out = pl.pallas_call(
        functools.partial(_pam_kernel, tk=tk, hw_valid=HW,
                          needs_mask=needs_mask, exp_dtype=exp_dtype),
        out_shape=jax.ShapeDtypeStruct((B, C, hw_pad), jnp.float32),
        grid_spec=pltpu.PrefetchScalarGridSpec(
            num_scalar_prefetch=0,
            grid=(B, n_q, n_k),
            in_specs=[
                pl.BlockSpec((2,), lambda b, qi, ki: (0,),
                             memory_space=pltpu.MemorySpace.SMEM),    # gammas
                pl.BlockSpec((1, C8, tq), lambda b, qi, ki: (b, 0, qi)),  # q
                _buffered_spec((1, tk, C8), lambda b, qi, ki: (b, ki, 0), 3),  # k^T
                _buffered_spec((1, C, tk), lambda b, qi, ki: (b, 0, ki), 3),   # v
                pl.BlockSpec((1, C, tq), lambda b, qi, ki: (b, 0, qi)),   # x
                pl.BlockSpec((1, C, C), lambda b, qi, ki: (b, 0, 0)),     # CAM att
            ],
            out_specs=pl.BlockSpec((1, C, tq), lambda b, qi, ki: (b, 0, qi)),
            scratch_shapes=[
                pltpu.VMEM((1, tq), jnp.float32),   # running max
                pltpu.VMEM((1, tq), jnp.float32),   # running sum
                pltpu.VMEM((C, tq), jnp.float32),   # PAM accumulator (C, Tq)
            ],
        ),
        compiler_params=pltpu.CompilerParams(
            dimension_semantics=("parallel", "parallel", "arbitrary"),
            vmem_limit_bytes=_vmem_limit(pam_bytes)),
    )(gammas, q_p, k_t, v_p, x_p, att)

    if needs_mask:
        out = out[:, :, :HW]
    return out.reshape(B, C, H, W)


# ----------------------------------------------------------------------------
# Pure-JAX f32 reference mirroring the PyTorch forward exactly.
# ----------------------------------------------------------------------------
def dual_attention_reference(x_nchw, params):
    B, C, H, W = x_nchw.shape
    HW = H * W
    xf = x_nchw.reshape(B, C, HW)

    # PAM
    q = jnp.einsum("oc,bcs->bos", params["wq"], xf) + params["bq"][None, :, :]
    k = jnp.einsum("oc,bcs->bos", params["wk"], xf) + params["bk"][None, :, :]
    v = jnp.einsum("oc,bcs->bos", params["wv"], xf) + params["bv"][None, :, :]
    energy = jnp.einsum("bci,bcj->bij", q, k)                  # (B, HW, HW)
    att = jax.nn.softmax(energy, axis=-1)
    pam = jnp.einsum("bcj,bij->bci", v, att)                   # (B, C, HW)
    pam = params["gamma_pam"][0] * pam + xf

    # CAM
    energy_c = jnp.einsum("bcs,bds->bcd", xf, xf)              # (B, C, C)
    energy_new = jnp.max(energy_c, axis=-1, keepdims=True) - energy_c
    att_c = jax.nn.softmax(energy_new, axis=-1)
    cam = jnp.einsum("bcd,bds->bcs", att_c, xf)                # (B, C, HW)
    cam = params["gamma_cam"][0] * cam + xf

    return (pam + cam).reshape(B, C, H, W)


def make_params(key, C):
    C8 = C // 8
    ks = jax.random.split(key, 6)
    scale = 0.1
    return {
        "wq": scale * jax.random.normal(ks[0], (C8, C), jnp.float32),
        "bq": scale * jax.random.normal(ks[1], (C8, 1), jnp.float32),
        "wk": scale * jax.random.normal(ks[2], (C8, C), jnp.float32),
        "bk": scale * jax.random.normal(ks[3], (C8, 1), jnp.float32),
        "wv": scale * jax.random.normal(ks[4], (C, C), jnp.float32),
        "bv": scale * jax.random.normal(ks[5], (C, 1), jnp.float32),
        # PyTorch default is 0.0; use nonzero deterministic values here so the
        # attention hot path is exercised (do not drop into training as-is).
        "gamma_pam": jnp.full((1,), 0.5, jnp.float32),
        "gamma_cam": jnp.full((1,), 0.25, jnp.float32),
    }


if __name__ == "__main__":
    key = jax.random.PRNGKey(0)

    # 1) Small smoke test (single-tile path).
    B, C, H, W = 2, 16, 8, 8
    kx, kp = jax.random.split(key)
    x = jax.random.normal(kx, (B, C, H, W), jnp.float32)
    params = make_params(kp, C)
    out = jax.block_until_ready(dual_attention(x, params))
    ref = dual_attention_reference(x, params)
    assert out.shape == (B, C, H, W)
    err = float(jnp.max(jnp.abs(out - ref)))
    # bf16 MXU / bf16 exp on the PAM path (f32 accumulation) -> loosened tol.
    assert err < 2e-2, f"single-tile path error {err}"

    # 2) Tiled + padded/masked path (HW = 33*33 = 1089 is not a tile multiple).
    B2, C2, H2, W2 = 2, 16, 33, 33
    kx2, kp2 = jax.random.split(kp)
    x2 = jax.random.normal(kx2, (B2, C2, H2, W2), jnp.float32)
    params2 = make_params(kp2, C2)
    out2 = jax.block_until_ready(dual_attention(x2, params2))
    ref2 = dual_attention_reference(x2, params2)
    assert out2.shape == (B2, C2, H2, W2)
    err2 = float(jnp.max(jnp.abs(out2 - ref2)))
    assert err2 < 2e-2, f"tiled/masked path error {err2}"

    print("KERNEL_OK")
</pallas_src>

<mosaic_0001>
module attributes {stable_mosaic.version = 11 : i64} {
  func.func @_proj_cam_kernel(%arg0: i32, %arg1: i32, %arg2: memref<20x16xbf16, #tpu.memory_space<vmem>>, %arg3: memref<20x1xf32, #tpu.memory_space<vmem>>, %arg4: memref<1x16x64xf32, #tpu.memory_space<vmem>>, %arg5: memref<1x2x64xbf16, #tpu.memory_space<vmem>>, %arg6: memref<1x64x2xbf16, #tpu.memory_space<vmem>>, %arg7: memref<1x16x64xbf16, #tpu.memory_space<vmem>>, %arg8: memref<1x16x16xf32, #tpu.memory_space<vmem>>, %arg9: memref<16x16xf32, #tpu.memory_space<vmem>>) attributes {dimension_semantics = [#tpu.dimension_semantics<parallel>, #tpu.dimension_semantics<arbitrary>], iteration_bounds = array<i64: 2, 1>, scalar_prefetch = 0 : i64, scratch_operands = 1 : i64, tpu.core_type = #tpu.core_type<tc>, window_params = [{pipeline_mode = #tpu.pipeline_mode<synchronous>, transform_indices = @transform_0, window_bounds = array<i64: 20, 16>}, {pipeline_mode = #tpu.pipeline_mode<synchronous>, transform_indices = @transform_1, window_bounds = array<i64: 20, 1>}, {transform_indices = @transform_2, window_bounds = array<i64: 1, 16, 64>}, {transform_indices = @transform_3, window_bounds = array<i64: 1, 2, 64>}, {transform_indices = @transform_4, window_bounds = array<i64: 1, 64, 2>}, {transform_indices = @transform_5, window_bounds = array<i64: 1, 16, 64>}, {transform_indices = @transform_6, window_bounds = array<i64: 1, 16, 16>}]} {
    %c0_i32 = arith.constant 0 : i32
    %0 = arith.cmpi eq, %arg1, %c0_i32 : i32
    %1 = arith.extui %0 : i1 to i32
    %c0_i32_0 = arith.constant 0 : i32
    %2 = arith.cmpi ne, %1, %c0_i32_0 : i32
    scf.if %2 {
      %cst_23 = arith.constant 0.000000e+00 : f32
      %34 = vector.broadcast %cst_23 : f32 to vector<16x16xf32>
      %c0_24 = arith.constant 0 : index
      %c0_25 = arith.constant 0 : index
      %35 = vector.load %arg9[%c0_24, %c0_25] : memref<16x16xf32, #tpu.memory_space<vmem>>, vector<16x16xf32>
      tpu.vector_store %arg9[%c0_24, %c0_25], %34 {strides = array<i32>} : memref<16x16xf32, #tpu.memory_space<vmem>>, vector<16x16xf32>,
    } else {
    }
    %c0 = arith.constant 0 : index
    %c0_1 = arith.constant 0 : index
    %c0_2 = arith.constant 0 : index
    %3 = vector.load %arg4[%c0, %c0_1, %c0_2] : memref<1x16x64xf32, #tpu.memory_space<vmem>>, vector<1x16x64xf32>
    %4 = vector.shape_cast %3 : vector<1x16x64xf32> to vector<16x64xf32>
    %5 = arith.truncf %4 : vector<16x64xf32> to vector<16x64xbf16>
    %c0_3 = arith.constant 0 : index
    %c0_4 = arith.constant 0 : index
    %6 = vector.load %arg2[%c0_3, %c0_4] : memref<20x16xbf16, #tpu.memory_space<vmem>>, vector<20x16xbf16>
    %cst = arith.constant dense<0.000000e+00> : vector<20x64xf32>
    %7 = tpu.matmul %6, %5, %cst {dimension_numbers = #tpu.dot_dimension_numbers<[1], [0], [0], [1], [0, 0, 1, 1], [], []>} : vector<20x16xbf16>, vector<16x64xbf16>, vector<20x64xf32> -> vector<20x64xf32>
    %c0_5 = arith.constant 0 : index
    %c0_6 = arith.constant 0 : index
    %8 = vector.load %arg3[%c0_5, %c0_6] : memref<20x1xf32, #tpu.memory_space<vmem>>, vector<20x1xf32>
    %9 = vector.broadcast %8 : vector<20x1xf32> to vector<20x64xf32>
    %10 = arith.addf %7, %9 : vector<20x64xf32>
    %11 = vector.extract_strided_slice %10 {offsets = [0, 0], sizes = [2, 64], strides = [1, 1]} : vector<20x64xf32> to vector<2x64xf32>
    %12 = arith.truncf %11 : vector<2x64xf32> to vector<2x64xbf16>
    %c0_7 = arith.constant 0 : index
    %c0_8 = arith.constant 0 : index
    %c0_9 = arith.constant 0 : index
    %13 = vector.load %arg5[%c0_7, %c0_8, %c0_9] : memref<1x2x64xbf16, #tpu.memory_space<vmem>>, vector<1x2x64xbf16>
    %14 = vector.shape_cast %13 : vector<1x2x64xbf16> to vector<2x64xbf16>
    %15 = vector.shape_cast %12 : vector<2x64xbf16> to vector<1x2x64xbf16>
    tpu.vector_store %arg5[%c0_7, %c0_8, %c0_9], %15 {strides = array<i32>} : memref<1x2x64xbf16, #tpu.memory_space<vmem>>, vector<1x2x64xbf16>,
    %16 = vector.extract_strided_slice %10 {offsets = [2, 0], sizes = [2, 64], strides = [1, 1]} : vector<20x64xf32> to vector<2x64xf32>
    %17 = tpu.transpose %16, [1, 0] : vector<2x64xf32> -> vector<64x2xf32>
    %18 = arith.truncf %17 : vector<64x2xf32> to vector<64x2xbf16>
    %c0_10 = arith.constant 0 : index
    %c0_11 = arith.constant 0 : index
    %c0_12 = arith.constant 0 : index
    %19 = vector.load %arg6[%c0_10, %c0_11, %c0_12] : memref<1x64x2xbf16, #tpu.memory_space<vmem>>, vector<1x64x2xbf16>
    %20 = vector.shape_cast %19 : vector<1x64x2xbf16> to vector<64x2xbf16>
    %21 = vector.shape_cast %18 : vector<64x2xbf16> to vector<1x64x2xbf16>
    tpu.vector_store %arg6[%c0_10, %c0_11, %c0_12], %21 {strides = array<i32>} : memref<1x64x2xbf16, #tpu.memory_space<vmem>>, vector<1x64x2xbf16>,
    %22 = vector.extract_strided_slice %10 {offsets = [4, 0], sizes = [16, 64], strides = [1, 1]} : vector<20x64xf32> to vector<16x64xf32>
    %23 = arith.truncf %22 : vector<16x64xf32> to vector<16x64xbf16>
    %c0_13 = arith.constant 0 : index
    %c0_14 = arith.constant 0 : index
    %c0_15 = arith.constant 0 : index
    %24 = vector.load %arg7[%c0_13, %c0_14, %c0_15] : memref<1x16x64xbf16, #tpu.memory_space<vmem>>, vector<1x16x64xbf16>
    %25 = vector.shape_cast %24 : vector<1x16x64xbf16> to vector<16x64xbf16>
    %26 = vector.shape_cast %23 : vector<16x64xbf16> to vector<1x16x64xbf16>
    tpu.vector_store %arg7[%c0_13, %c0_14, %c0_15], %26 {strides = array<i32>} : memref<1x16x64xbf16, #tpu.memory_space<vmem>>, vector<1x16x64xbf16>,
    %c0_16 = arith.constant 0 : index
    %c0_17 = arith.constant 0 : index
    %27 = vector.load %arg9[%c0_16, %c0_17] : memref<16x16xf32, #tpu.memory_space<vmem>>, vector<16x16xf32>
    %cst_18 = arith.constant dense<0.000000e+00> : vector<16x16xf32>
    %28 = tpu.matmul %4, %4, %cst_18 {dimension_numbers = #tpu.dot_dimension_numbers<[1], [1], [0], [0], [0, 0, 1, 0], [], []>} : vector<16x64xf32>, vector<16x64xf32>, vector<16x16xf32> -> vector<16x16xf32>
    %29 = arith.addf %27, %28 : vector<16x16xf32>
    %c0_19 = arith.constant 0 : index
    %c0_20 = arith.constant 0 : index
    %30 = vector.load %arg9[%c0_19, %c0_20] : memref<16x16xf32, #tpu.memory_space<vmem>>, vector<16x16xf32>
    tpu.vector_store %arg9[%c0_19, %c0_20], %29 {strides = array<i32>} : memref<16x16xf32, #tpu.memory_space<vmem>>, vector<16x16xf32>,
    %c0_i32_21 = arith.constant 0 : i32
    %31 = arith.cmpi eq, %arg1, %c0_i32_21 : i32
    %32 = arith.extui %31 : i1 to i32
    %c0_i32_22 = arith.constant 0 : i32
    %33 = arith.cmpi ne, %32, %c0_i32_22 : i32
    scf.if %33 {
      %c0_23 = arith.constant 0 : index
      %c0_24 = arith.constant 0 : index
      %34 = vector.load %arg9[%c0_23, %c0_24] : memref<16x16xf32, #tpu.memory_space<vmem>>, vector<16x16xf32>
      %cst_25 = arith.constant dense<0xFF800000> : vector<16xf32>
      %35 = vector.multi_reduction <maximumf>, %34, %cst_25 [1] : vector<16x16xf32> to vector<16xf32>
      %36 = vector.shape_cast %35 : vector<16xf32> to vector<16x1xf32>
      %37 = vector.broadcast %36 : vector<16x1xf32> to vector<16x16xf32>
      %38 = arith.subf %37, %34 : vector<16x16xf32>
      %cst_26 = arith.constant dense<0xFF800000> : vector<16xf32>
      %39 = vector.multi_reduction <maximumf>, %38, %cst_26 [1] : vector<16x16xf32> to vector<16xf32>
      %40 = vector.shape_cast %39 : vector<16xf32> to vector<16x1xf32>
      %41 = vector.broadcast %40 : vector<16x1xf32> to vector<16x16xf32>
      %42 = arith.subf %38, %41 : vector<16x16xf32>
      %43 = math.exp %42 : vector<16x16xf32>
      %cst_27 = arith.constant dense<0.000000e+00> : vector<16xf32>
      %44 = vector.multi_reduction <add>, %43, %cst_27 [1] : vector<16x16xf32> to vector<16xf32>
      %45 = vector.shape_cast %44 : vector<16xf32> to vector<16x1xf32>
      %46 = vector.broadcast %45 : vector<16x1xf32> to vector<16x16xf32>
      %47 = arith.divf %43, %46 : vector<16x16xf32>
      %c0_28 = arith.constant 0 : index
      %c0_29 = arith.constant 0 : index
      %c0_30 = arith.constant 0 : index
      %48 = vector.load %arg8[%c0_28, %c0_29, %c0_30] : memref<1x16x16xf32, #tpu.memory_space<vmem>>, vector<1x16x16xf32>
      %49 = vector.shape_cast %48 : vector<1x16x16xf32> to vector<16x16xf32>
      %50 = vector.shape_cast %47 : vector<16x16xf32> to vector<1x16x16xf32>
      tpu.vector_store %arg8[%c0_28, %c0_29, %c0_30], %50 {strides = array<i32>} : memref<1x16x16xf32, #tpu.memory_space<vmem>>, vector<1x16x16xf32>,
    } else {
    }
    return
  }
  func.func @transform_0(%arg0: i32, %arg1: i32) -> (i32, i32) {
    %c0_i32 = arith.constant 0 : i32
    %c0_i32_0 = arith.constant 0 : i32
    %c0_i32_1 = arith.constant 0 : i32
    return %c0_i32, %c0_i32_0 : i32, i32
  }
  func.func @transform_1(%arg0: i32, %arg1: i32) -> (i32, i32) {
    %c0_i32 = arith.constant 0 : i32
    %c0_i32_0 = arith.constant 0 : i32
    %c0_i32_1 = arith.constant 0 : i32
    return %c0_i32, %c0_i32_0 : i32, i32
  }
  func.func @transform_2(%arg0: i32, %arg1: i32) -> (i32, i32, i32) {
    %c0_i32 = arith.constant 0 : i32
    %c0_i32_0 = arith.constant 0 : i32
    return %arg0, %c0_i32, %arg1 : i32, i32, i32
  }
  func.func @transform_3(%arg0: i32, %arg1: i32) -> (i32, i32, i32) {
    %c0_i32 = arith.constant 0 : i32
    %c0_i32_0 = arith.constant 0 : i32
    return %arg0, %c0_i32, %arg1 : i32, i32, i32
  }
  func.func @transform_4(%arg0: i32, %arg1: i32) -> (i32, i32, i32) {
    %c0_i32 = arith.constant 0 : i32
    %c0_i32_0 = arith.constant 0 : i32
    return %arg0, %arg1, %c0_i32 : i32, i32, i32
  }
  func.func @transform_5(%arg0: i32, %arg1: i32) -> (i32, i32, i32) {
    %c0_i32 = arith.constant 0 : i32
    %c0_i32_0 = arith.constant 0 : i32
    return %arg0, %c0_i32, %arg1 : i32, i32, i32
  }
  func.func @transform_6(%arg0: i32, %arg1: i32) -> (i32, i32, i32) {
    %c0_i32 = arith.constant 0 : i32
    %c0_i32_0 = arith.constant 0 : i32
    %c0_i32_1 = arith.constant 0 : i32
    return %arg0, %c0_i32, %c0_i32_0 : i32, i32, i32
  }
}

</mosaic_0001>

<llo_original>
// kernel: tpu_custom_call.1
$region0: #{tpu_custom_call.1}
  #allocation0 [shape = 'u32[]', space=smem, size = 0x4, offset = 0x4, fixed_abs, tag = 'smem constant byte address 0x4 - core index']
  #allocation1 [shape = 'u32[144,128]{1,0:T(1,128)}', space=vmem, size = 0x12000, scoped, tag = 'internal scratch']
  #allocation2 [shape = 'f32[16,16]{1,0:T(8,128)}', space=vmem, size = 0x2000, scoped, tag = 'scratch operand']
  %s0 = inlined_call_operand.vmem [shape: bf16[20,16], index: 0, kind: input, shape index: {}]
  %s1 = inlined_call_operand.vmem [shape: f32[20,1], index: 1, kind: input, shape index: {}]
  %s2 = inlined_call_operand.vmem [shape: f32[2,16,64], index: 2, kind: input, shape index: {}]
  %s3 = inlined_call_operand.hbm [shape: bf16[2,2,64], index: 3, kind: output, shape index: {0}]
  %s4 = inlined_call_operand.vmem [shape: bf16[2,64,2], index: 4, kind: output, shape index: {1}]
  %s5 = inlined_call_operand.hbm [shape: bf16[2,16,64], index: 5, kind: output, shape index: {2}]
  %s6 = inlined_call_operand.hbm [shape: f32[2,16,16], index: 6, kind: output, shape index: {3}]
  %7 = xla_tuple %s3, %s4, %s5, %s6
  %s8 = sld [smem:[#allocation0]]
  $region77: #{tpu_custom_call.1} parent=0
    _
  %s10 = ssub.s32 1, %s8
  %s11 = scalar_select 0, %s10, %s8
  $region1: #{tpu_custom_call.1} parent=0
    #allocation3 [shape = 'u8[1024]{0}', space=vmem, size = 0x400, scoped, tag = 'output window, operand 0']
    #allocation4 [shape = 's32[2]{0}', space=sflag, size = 0x8, scoped, tag = 'scoped memory for tpu_custom_call.1']
    #allocation5 [shape = 'u8[8192]{0}', space=vmem, size = 0x2000, scoped, tag = 'output window, operand 2']
    #allocation6 [shape = 's32[2]{0}', space=sflag, size = 0x8, scoped, tag = 'scoped memory for tpu_custom_call.1']
    #allocation7 [shape = 'u8[16384]{0}', space=vmem, size = 0x4000, scoped, tag = 'output window, operand 3']
    %12 = vsyncpa [#allocation4], 0
    %s13 = scalar_lea.sflag [#allocation4], 1
    %14 = vsyncpa %s13, 0
    %15 = vsyncpa [#allocation6], 0
    %s16 = scalar_lea.sflag [#allocation6], 1
    %17 = vsyncpa %s16, 0
    loop: start=0, step=1, limit=4
    $region2: #{tpu_custom_call.1} parent=1 // loop_pre_header
      _
    $region3: #{tpu_custom_call.1} parent=1 // loop_header
      %s19 = sphi 0, %s23
      %p20 = scmp.ge.s32.totalorder %s19, 4
      %s26 = sphi 0, %s38
      %s27 = sphi 0, %s34
      %s28 = sphi 0, %s26
      %s29 = sphi 0, %s27
      %s30 = sphi 0, %s28
      %s31 = sphi 0, %s29
      %s39 = sphi 0, %s39
      %s41 = sphi 0, %s39
      %s42 = sphi 0, %s41
      %s56 = sphi 0, %s42
      %s60 = sphi 0, %s60
      %s62 = sphi 0, %s60
      %s63 = sphi 0, %s62
      %s77 = sphi 0, %s63
      %s85 = sphi 0, %s87
      %s88 = sphi 0, %s85
      %s89 = sphi 0, %s88
      %s105 = sphi 0, %s89
      %s113 = sphi 0, %s115
      %s116 = sphi 0, %s113
      %s117 = sphi 0, %s116
      %s133 = sphi 0, %s117
      %s141 = sphi 0, %s143
      %s144 = sphi 0, %s141
      %s145 = sphi 0, %s144
      %s161 = sphi 0, %s145
      %s169 = sphi 0, %s171
      %s172 = sphi 0, %s169
      %s173 = sphi 0, %s172
      %s189 = sphi 0, %s173
      %s195 = sphi 0, %s197
      %s198 = sphi 0, %s195
      %s199 = sphi 0, %s198
      %s215 = sphi 0, %s199
    $region4: #{tpu_custom_call.1} parent=1 // loop_header_branch
      %22 = sbr.rel (%p20) target = $region8
    $region5: #{tpu_custom_call.1} parent=1 // loop_body
      %s24 = ssub.s32 %s19, 1
      %s25 = ssub.s32 %s19, 2
      %s32 = sadd.s32 1, %s27
      %p33 = scmp.ge.s32.totalorder %s32, 1
      %s34 = scalar_select %p33, 0, %s32
      %s35 = sadd.s32 1, %s26
      %s36 = scalar_select %p33, %s35, %s26
      %p37 = scmp.ge.s32.totalorder %s36, 2
      %s38 = scalar_select %p37, 0, %s36
      %s40 = sadd.s32 %s39, 1
      %p43 = scmp.eq.s32.totalorder %s19, 1
      %p44 = scmp.ne.s32.totalorder %s39, %s41
      %p45 = scmp.eq.s32.totalorder %s19, 0
      %p46 = por %p44, %p45
      %p47 = scmp.ne.s32.totalorder %s39, %s41
      %p48 = scmp.eq.s32.totalorder %s24, 1
      %p49 = por %p47, %p48
      %p50 = scmp.ne.s32.totalorder %s41, %s42
      %p51 = scmp.eq.s32.totalorder %s24, 0
      %p52 = por %p50, %p51
      %p53 = scmp.ne.s32.totalorder %s41, %s42
      %p54 = scmp.eq.s32.totalorder %s25, 1
      %p55 = por %p53, %p54
      %p57 = scmp.ne.s32.totalorder %s42, %s56
      %p58 = scmp.eq.s32.totalorder %s25, 0
      %p59 = por %p57, %p58
      %s61 = sadd.s32 %s60, 1
      %p64 = scmp.eq.s32.totalorder %s19, 1
      %p65 = scmp.ne.s32.totalorder %s60, %s62
      %p66 = scmp.eq.s32.totalorder %s19, 0
      %p67 = por %p65, %p66
      %p68 = scmp.ne.s32.totalorder %s60, %s62
      %p69 = scmp.eq.s32.totalorder %s24, 1
      %p70 = por %p68, %p69
      %p71 = scmp.ne.s32.totalorder %s62, %s63
      %p72 = scmp.eq.s32.totalorder %s24, 0
      %p73 = por %p71, %p72
      %p74 = scmp.ne.s32.totalorder %s62, %s63
      %p75 = scmp.eq.s32.totalorder %s25, 1
      %p76 = por %p74, %p75
      %p78 = scmp.ne.s32.totalorder %s63, %s77
      %p79 = scmp.eq.s32.totalorder %s25, 0
      %p80 = por %p78, %p79
      %s81 = ssub.s32 %s26, %s38
      %s82 = ssub.s32 %s27, %s34
      %s83 = sor.u32 %s81, %s82
      %p84 = scmp.eq.s32.totalorder %s83, 0
      %s86 = sadd.s32 %s85, 1
      %s87 = scalar_select %p84, %s85, %s86
      %p90 = pneg %p84
      %p91 = scmp.eq.s32.totalorder %s19, 1
      %p92 = por %p90, %p91
      %p93 = scmp.ne.s32.totalorder %s85, %s88
      %p94 = scmp.eq.s32.totalorder %s19, 0
      %p95 = por %p93, %p94
      %p96 = scmp.ne.s32.totalorder %s85, %s88
      %p97 = scmp.eq.s32.totalorder %s24, 1
      %p98 = por %p96, %p97
      %p99 = scmp.ne.s32.totalorder %s88, %s89
      %p100 = scmp.eq.s32.totalorder %s24, 0
      %p101 = por %p99, %p100
      %p102 = scmp.ne.s32.totalorder %s88, %s89
      %p103 = scmp.eq.s32.totalorder %s25, 1
      %p104 = por %p102, %p103
      %p106 = scmp.ne.s32.totalorder %s89, %s105
      %p107 = scmp.eq.s32.totalorder %s25, 0
      %p108 = por %p106, %p107
      %s109 = ssub.s32 %s26, %s38
      %s110 = ssub.s32 %s27, %s34
      %s111 = sor.u32 %s109, %s110
      %p112 = scmp.eq.s32.totalorder %s111, 0
      %s114 = sadd.s32 %s113, 1
      %s115 = scalar_select %p112, %s113, %s114
      %p118 = pneg %p112
      %p119 = scmp.eq.s32.totalorder %s19, 1
      %p120 = por %p118, %p119
      %p121 = scmp.ne.s32.totalorder %s113, %s116
      %p122 = scmp.eq.s32.totalorder %s19, 0
      %p123 = por %p121, %p122
      %p124 = scmp.ne.s32.totalorder %s113, %s116
      %p125 = scmp.eq.s32.totalorder %s24, 1
      %p126 = por %p124, %p125
      %p127 = scmp.ne.s32.totalorder %s116, %s117
      %p128 = scmp.eq.s32.totalorder %s24, 0
      %p129 = por %p127, %p128
      %p130 = scmp.ne.s32.totalorder %s116, %s117
      %p131 = scmp.eq.s32.totalorder %s25, 1
      %p132 = por %p130, %p131
      %p134 = scmp.ne.s32.totalorder %s117, %s133
      %p135 = scmp.eq.s32.totalorder %s25, 0
      %p136 = por %p134, %p135
      %s137 = ssub.s32 %s26, %s38
      %s138 = ssub.s32 %s27, %s34
      %s139 = sor.u32 %s137, %s138
      %p140 = scmp.eq.s32.totalorder %s139, 0
      %s142 = sadd.s32 %s141, 1
      %s143 = scalar_select %p140, %s141, %s142
      %p146 = pneg %p140
      %p147 = scmp.eq.s32.totalorder %s19, 1
      %p148 = por %p146, %p147
      %p149 = scmp.ne.s32.totalorder %s141, %s144
      %p150 = scmp.eq.s32.totalorder %s19, 0
      %p151 = por %p149, %p150
      %p152 = scmp.ne.s32.totalorder %s141, %s144
      %p153 = scmp.eq.s32.totalorder %s24, 1
      %p154 = por %p152, %p153
      %p155 = scmp.ne.s32.totalorder %s144, %s145
      %p156 = scmp.eq.s32.totalorder %s24, 0
      %p157 = por %p155, %p156
      %p158 = scmp.ne.s32.totalorder %s144, %s145
      %p159 = scmp.eq.s32.totalorder %s25, 1
      %p160 = por %p158, %p159
      %p162 = scmp.ne.s32.totalorder %s145, %s161
      %p163 = scmp.eq.s32.totalorder %s25, 0
      %p164 = por %p162, %p163
      %s165 = ssub.s32 %s26, %s38
      %s166 = ssub.s32 %s27, %s34
      %s167 = sor.u32 %s165, %s166
      %p168 = scmp.eq.s32.totalorder %s167, 0
      %s170 = sadd.s32 %s169, 1
      %s171 = scalar_select %p168, %s169, %s170
      %p174 = pneg %p168
      %p175 = scmp.eq.s32.totalorder %s19, 1
      %p176 = por %p174, %p175
      %p177 = scmp.ne.s32.totalorder %s169, %s172
      %p178 = scmp.eq.s32.totalorder %s19, 0
      %p179 = por %p177, %p178
      %p180 = scmp.ne.s32.totalorder %s169, %s172
      %p181 = scmp.eq.s32.totalorder %s24, 1
      %p182 = por %p180, %p181
      %p183 = scmp.ne.s32.totalorder %s172, %s173
      %p184 = scmp.eq.s32.totalorder %s24, 0
      %p185 = por %p183, %p184
      %p186 = scmp.ne.s32.totalorder %s172, %s173
      %p187 = scmp.eq.s32.totalorder %s25, 1
      %p188 = por %p186, %p187
      %p190 = scmp.ne.s32.totalorder %s173, %s189
      %p191 = scmp.eq.s32.totalorder %s25, 0
      %p192 = por %p190, %p191
      %s193 = ssub.s32 %s26, %s38
      %p194 = scmp.eq.s32.totalorder %s193, 0
      %s196 = sadd.s32 %s195, 1
      %s197 = scalar_select %p194, %s195, %s196
      %p200 = pneg %p194
      %p201 = scmp.eq.s32.totalorder %s19, 1
      %p202 = por %p200, %p201
      %p203 = scmp.ne.s32.totalorder %s195, %s198
      %p204 = scmp.eq.s32.totalorder %s19, 0
      %p205 = por %p203, %p204
      %p206 = scmp.ne.s32.totalorder %s195, %s198
      %p207 = scmp.eq.s32.totalorder %s24, 1
      %p208 = por %p206, %p207
      %p209 = scmp.ne.s32.totalorder %s198, %s199
      %p210 = scmp.eq.s32.totalorder %s24, 0
      %p211 = por %p209, %p210
      %p212 = scmp.ne.s32.totalorder %s198, %s199
      %p213 = scmp.eq.s32.totalorder %s25, 1
      %p214 = por %p212, %p213
      %p216 = scmp.ne.s32.totalorder %s199, %s215
      %p217 = scmp.eq.s32.totalorder %s25, 0
      %p218 = por %p216, %p217
      %p219 = scmp.le.s32.totalorder 1, %s19
      %p220 = scmp.lt.s32.totalorder %s19, 3
      %p221 = pnand %p219, %p220
      %p222 = pneg %p221
      // Predicated region
      $region9: #{tpu_custom_call.1} parent=5 // pred_check
        _
      $region10: #{tpu_custom_call.1} parent=5 // pred_check_branch
        %224 = sbr.rel (%p221) target = $region12
      $region11: #{tpu_custom_call.1} parent=5 // pred_region
        %s225 = ssub.s32 %s19, 1
        // Predicated region
        $region13: #{tpu_custom_call.1} parent=11 // pred_check
          %p226 = pneg %p52
        $region14: #{tpu_custom_call.1} parent=11 // pred_check_branch
          %228 = sbr.rel (%p226) target = $region16
        $region15: #{tpu_custom_call.1} parent=11 // pred_region
          _
        $region16: #{tpu_custom_call.1} parent=11 // pred_fallthru
          _
        // Predicated region
        $region17: #{tpu_custom_call.1} parent=11 // pred_check
          %p229 = pneg %p73
        $region18: #{tpu_custom_call.1} parent=11 // pred_check_branch
          %231 = sbr.rel (%p229) target = $region20
        $region19: #{tpu_custom_call.1} parent=11 // pred_region
          _
        $region20: #{tpu_custom_call.1} parent=11 // pred_fallthru
          _
      $region12: #{tpu_custom_call.1} parent=5 // pred_fallthru
        _
      %p232 = scmp.lt.s32.totalorder %s19, 2
      // Predicated region
      $region21: #{tpu_custom_call.1} parent=5 // pred_check
        %p233 = pneg %p232
      $region22: #{tpu_custom_call.1} parent=5 // pred_check_branch
        %235 = sbr.rel (%p233) target = $region24
      $region23: #{tpu_custom_call.1} parent=5 // pred_region
        // Predicated region
        $region25: #{tpu_custom_call.1} parent=23 // pred_check
          %p236 = pneg %p95
        $region26: #{tpu_custom_call.1} parent=23 // pred_check_branch
          %238 = sbr.rel (%p236) target = $region28
        $region27: #{tpu_custom_call.1} parent=23 // pred_region
          %p239 = scmp.lt.s32.totalorder %s26, 1
          %s240 = scalar_select %p239, %s26, 1
          %p241 = scmp.lt.s32.totalorder %s27, 0
          %s242 = scalar_select %p241, %s27, 0
          %s243 = smul.addr %s240, 2
          %s244 = sadd.s32 %s242, %s243
          %s245 = smul.addr %s244, 8
          %s246 = scalar_lea.vmem %s2, %s245
        $region28: #{tpu_custom_call.1} parent=23 // pred_fallthru
          _
      $region24: #{tpu_custom_call.1} parent=5 // pred_fallthru
        _
      %p247 = scmp.le.s32.totalorder 1, %s19
      %p248 = scmp.lt.s32.totalorder %s19, 3
      %p249 = pnand %p247, %p248
      %p250 = pneg %p249
      // Predicated region
      $region29: #{tpu_custom_call.1} parent=5 // pred_check
        _
      $region30: #{tpu_custom_call.1} parent=5 // pred_check_branch
        %252 = sbr.rel (%p249) target = $region32
      $region31: #{tpu_custom_call.1} parent=5 // pred_region
        %s253 = ssub.s32 %s19, 1
        %p254 = pneg %p52
        %p255 = pneg %p49
        %p256 = pneg %p73
        %p257 = pneg %p70
        %p258 = scmp.lt.s32.totalorder %s28, 1
        %s259 = scalar_select %p258, %s28, 1
        %p260 = scmp.lt.s32.totalorder %s29, 0
        %s261 = scalar_select %p260, %s29, 0
        %s262 = smul.addr %s259, 2
        %s263 = sadd.s32 %s261, %s262
        %s264 = smul.addr %s263, 8
        %s265 = scalar_lea.vmem %s2, %s264
        %p266 = pneg %p101
        %p267 = pneg %p98
        %p268 = pneg %p129
        %p269 = pneg %p126
        %s270 = sand.u32 %s116, 1
        %s271 = scalar_lea.sflag [#allocation4], %s270
        %s272 = sand.u32 %s116, 1
        %s273 = scalar_lea.vmem [#allocation3], %s272
        %p274 = pneg %p157
        %p275 = pneg %p154
        %s276 = smul.u32 8, %s29
        %p277 = scmp.lt.s32.totalorder %s28, 1
        %s278 = scalar_select %p277, %s28, 1
        %p279 = scmp.lt.s32.totalorder %s276, 7
        %s280 = scalar_select %p279, %s276, 7
        %s281 = smul.addr %s278, 8
        %s282 = sadd.s32 %s280, %s281
        %s283 = smul.addr %s282, 4
        %s284 = scalar_lea.vmem %s4, %s283
        %p285 = pneg %p185
        %p286 = pneg %p182
        %s287 = sand.u32 %s24, 1
        %s288 = scalar_lea.sflag [#allocation6], %s287
        %s289 = sand.u32 %s172, 1
        %s290 = smul.addr %s289, 8
        %s291 = scalar_lea.vmem [#allocation5], %s290
        %p292 = pneg %p211
        %p293 = pneg %p208
        %s294 = sand.u32 %s24, 1
        %s295 = scalar_lea.sflag [#allocation6], %s294
        %s296 = sand.u32 %s198, 1
        %s297 = smul.addr %s296, 16
        %s298 = scalar_lea.vmem [#allocation7], %s297
        %p299 = scmp.lt.s32.totalorder %s28, 1
        %s300 = scalar_select %p299, %s28, 1
        %p301 = scmp.lt.s32.totalorder %s29, 0
        %s302 = scalar_select %p301, %s29, 0
        %s303 = smul.addr %s300, 2
        %s304 = sadd.s32 %s302, %s303
        %s305 = smul.addr %s304, 8
        %s306 = scalar_lea.vmem %s2, %s305
        %s307 = smul.u32 8, %s29
        %p308 = scmp.lt.s32.totalorder %s28, 1
        %s309 = scalar_select %p308, %s28, 1
        %p310 = scmp.lt.s32.totalorder %s307, 7
        %s311 = scalar_select %p310, %s307, 7
        %s312 = smul.addr %s309, 8
        %s313 = sadd.s32 %s311, %s312
        %s314 = smul.addr %s313, 4
        %s315 = scalar_lea.vmem %s4, %s314
        %s316 = smul.u32 8, %s29
        %p318 = scmp.eq.s32.totalorder %s29, 0
        // Predicated region
        $region33: #{tpu_custom_call.1} parent=31 // pred_check
          %p319 = pneg %p318
        $region34: #{tpu_custom_call.1} parent=31 // pred_check_branch
          %321 = sbr.rel (%p319) target = $region36
        $region35: #{tpu_custom_call.1} parent=31 // pred_region
          %vm322 = vcmask 130048
          %323 = vst.msk [vmem:[#allocation2] sm:$0xff] %vm322, 0.0
          %324 = vst.msk [vmem:[#allocation2 + $0x8] sm:$0xff] %vm322, 0.0
        $region36: #{tpu_custom_call.1} parent=31 // pred_fallthru
          _
        %v325 = vld [vmem:[%s306] sm:$0xff]
        %v326 = vld [vmem:[%s306 + $0x8] sm:$0xff]
        %v327 = vpack.c.bf16 %v326, %v325
        %v328 = vld [vmem:[%s0] sm:$0xf]
        %v329 = vld [vmem:[%s0 + $0x4] sm:$0xf]
        %v330 = vld [vmem:[%s0 + $0x8] sm:$0x3]
        %v331 = vld [vmem:[%s1] sm:$0xff]
        %v332 = vld [vmem:[%s1 + $0x8] sm:$0xff]
        %v333 = vld [vmem:[%s1 + $0x10] sm:$0xf]
        %335 = vset.pattern.permute.xlu0 0
        %336 = vperm.xlu0 %335, %v331
        %v337 = vpop.permute.xlu0 %336
        %340 = vset.pattern.permute.xlu0 0
        %341 = vperm.xlu0 %340, %v332
        %v342 = vpop.permute.xlu0 %341
        %345 = vset.pattern.permute.xlu0 0
        %346 = vperm.xlu0 %345, %v333
        %v347 = vpop.permute.xlu0 %346
        %v352 = vunpack.c.l.b16 %v328
        %v353 = vunpack.c.l.b16 %v329
        %v354 = vunpack.c.l.b16 %v330
        %v355 = vpack.c.b16 %v353, %v352
        %v356 = vpack.c.b16 %v354, %v354
        %vm357 = vcmask 130048
        %v359 = vsel %vm357, %v355, 0
        %v362 = vsel %vm357, %v356, 0
        %364 = vmatprep.subr.bf16.mxu0 0
        %365 = vmatpush1.bf16.msra.mxu0 0
        %366 = vmatprep.subr.bf16.mxu0 0
        %367 = vmatpush1.bf16.msra.mxu0 0
        %368 = vmatprep.subr.bf16.mxu0 0
        %369 = vmatpush1.bf16.msra.mxu0 0
        %370 = vmatprep.subr.bf16.mxu0 0
        %371 = vmatpush1.bf16.msra.mxu0 0
        %372 = vmatprep.subr.bf16.mxu0 0
        %373 = vmatpush1.bf16.msra.mxu0 0
        %374 = vmatprep.subr.bf16.mxu0 0
        %375 = vmatpush1.bf16.msra.mxu0 0
        %376 = vmatprep.subr.bf16.mxu0 0
        %377 = vmatpush1.bf16.msra.mxu0 0
        %378 = vmatprep.subr.bf16.mxu0 0
        %379 = vmatpush1.bf16.msra.mxu0 %v327
        %380 = vmatprep.subr.bf16.mxu0 0
        %381 = vmatpush2.bf16.msra.mxu0 0
        %382 = vmatprep.subr.bf16.mxu0 0
        %383 = vmatpush2.bf16.msra.mxu0 0
        %384 = vmatprep.subr.bf16.mxu0 0
        %385 = vmatpush2.bf16.msra.mxu0 0
        %386 = vmatprep.subr.bf16.mxu0 0
        %387 = vmatpush2.bf16.msra.mxu0 0
        %388 = vmatprep.subr.bf16.mxu0 0
        %389 = vmatpush2.bf16.msra.mxu0 0
        %390 = vmatprep.subr.bf16.mxu0 0
        %391 = vmatpush2.bf16.msra.mxu0 0
        %392 = vmatprep.subr.bf16.mxu0 0
        %393 = vmatpush2.bf16.msra.mxu0 0
        %394 = vmatprep.subr.bf16.mxu0 0
        %395 = vmatpush2.bf16.msra.mxu0 0
        %396 = vmatprep.mubr.bf16.mxu0 0
        %397 = vmatmul.mubr.bf16.gmra.mxu0 %v359
        %v398 = vpop.f32.mrf.mxu0
        %v399 = vadd.f32 %v337, %v398
        %v400 = vpop.f32.mrf.mxu0
        %v401 = vpop.f32.mrf.mxu0
        %v402 = vadd.f32 %v342, %v401
        %v403 = vpop.f32.mrf.mxu0
        %404 = vmatprep.mubr.bf16.mxu0 0
        %405 = vmatmul.mubr.bf16.gmra.mxu0 %v362
        %v406 = vpop.f32.mrf.mxu0
        %v407 = vadd.f32 %v347, %v406
        %v408 = vpop.f32.mrf.mxu0
        %v409 = vpop.f32.mrf.mxu0
        %v410 = vpop.f32.mrf.mxu0
        %411 = vdwg.mxu0
        %v412 = vpack.c.bf16 %v399, %v399
        %vm413 = vcmask 516096
        %414 = vst.msk [vmem:[%s273] sm:$0x1] %vm413, %v412
        %v416 = vrot.slane %v399, 2
        %418 = vxpose.xlu0.b32.start [1/16] %v416, 128
        %419 = vxpose.xlu0.b32.cont [2/16] 0.0, 128
        %420 = vxpose.xlu0.b32.cont [3/16] 0.0, 128
        %421 = vxpose.xlu0.b32.cont [4/16] 0.0, 128
        %422 = vxpose.xlu0.b32.cont [5/16] 0.0, 128
        %423 = vxpose.xlu0.b32.cont [6/16] 0.0, 128
        %424 = vxpose.xlu0.b32.cont [7/16] 0.0, 128
        %425 = vxpose.xlu0.b32.cont [8/16] 0.0, 128
        %426 = vxpose.xlu0.b32.cont [9/16] 0.0, 128
        %427 = vxpose.xlu0.b32.cont [10/16] 0.0, 128
        %428 = vxpose.xlu0.b32.cont [11/16] 0.0, 128
        %429 = vxpose.xlu0.b32.cont [12/16] 0.0, 128
        %430 = vxpose.xlu0.b32.cont [13/16] 0.0, 128
        %431 = vxpose.xlu0.b32.cont [14/16] 0.0, 128
        %432 = vxpose.xlu0.b32.cont [15/16] 0.0, 128
        %433 = vxpose.xlu0.b32.end [16/16] 0.0, 128
        %v434 = vpop.trf.xlu0
        %v435 = vpop.trf.xlu0
        %v436 = vpop.trf.xlu0
        %v437 = vpop.trf.xlu0
        %v438 = vpop.trf.xlu0
        %v439 = vpop.trf.xlu0
        %v440 = vpop.trf.xlu0
        %v441 = vpop.trf.xlu0
        %v442 = vpop.trf.xlu0
        %v443 = vpop.trf.xlu0
        %v444 = vpop.trf.xlu0
        %v445 = vpop.trf.xlu0
        %v446 = vpop.trf.xlu0
        %v447 = vpop.trf.xlu0
        %v448 = vpop.trf.xlu0
        %v449 = vpop.trf.xlu0
        %v450 = vpack.c.bf16 %v435, %v434
        %v451 = vpack.c.bf16 %v437, %v436
        %v452 = vpack.c.bf16 %v439, %v438
        %v453 = vpack.c.bf16 %v441, %v440
        %v458 = vunpack.c.l.b16 %v450
        %v459 = vunpack.c.h.b16 %v450
        %v460 = vunpack.c.l.b16 %v451
        %v461 = vunpack.c.h.b16 %v451
        %v462 = vunpack.c.l.b16 %v452
        %v463 = vunpack.c.h.b16 %v452
        %v464 = vunpack.c.l.b16 %v453
        %v465 = vunpack.c.h.b16 %v453
        %v466 = vpack.c.b16 %v458, %v458
        %v467 = vpack.c.b16 %v459, %v459
        %v468 = vpack.c.b16 %v460, %v460
        %v469 = vpack.c.b16 %v461, %v461
        %v470 = vpack.c.b16 %v462, %v462
        %v471 = vpack.c.b16 %v463, %v463
        %v472 = vpack.c.b16 %v464, %v464
        %v473 = vpack.c.b16 %v465, %v465
        %vm482 = vcmask 11264
        %483 = vst.msk [vmem:[%s315] sm:$0xf] %vm482, %v466
        %484 = vst.msk [vmem:[%s315 + $0x4] sm:$0xf] %vm482, %v467
        %485 = vst.msk [vmem:[%s315 + $0x8] sm:$0xf] %vm482, %v468
        %486 = vst.msk [vmem:[%s315 + $0xc] sm:$0xf] %vm482, %v469
        %487 = vst.msk [vmem:[%s315 + $0x10] sm:$0xf] %vm482, %v470
        %488 = vst.msk [vmem:[%s315 + $0x14] sm:$0xf] %vm482, %v471
        %489 = vst.msk [vmem:[%s315 + $0x18] sm:$0xf] %vm482, %v472
        %490 = vst.msk [vmem:[%s315 + $0x1c] sm:$0xf] %vm482, %v473
        %v491 = vpack.c.bf16 %v402, %v399
        %v492 = vpack.c.bf16 %v407, %v407
        %v495 = vunpack.c.l.b16 %v491
        %v496 = vunpack.c.h.b16 %v491
        %v497 = vunpack.c.l.b16 %v492
        %v498 = vpack.c.b16 %v495, %v495
        %v499 = vpack.c.b16 %v496, %v496
        %v500 = vpack.c.b16 %v497, %v497
        %vm501 = vcmask 1041408
        %vm502 = vcmask 1045508
        %vm503 = vmor %vm501, %vm502
        %v504 = vrot.slane %v498, 6
        %v505 = vrot.slane %v504, 4
        %v506 = vrot.slane %v499, 6
        %v507 = vsel %vm503, %v505, %v506
        %v508 = vrot.slane %v506, 4
        %v509 = vrot.slane %v500, 6
        %v510 = vsel %vm503, %v508, %v509
        %vm513 = vcmask 519168
        %514 = vst.msk [vmem:[%s291] sm:$0xf] %vm513, %v507
        %515 = vst.msk [vmem:[%s291 + $0x4] sm:$0xf] %vm513, %v510
        %v516 = vld [vmem:[#allocation2] sm:$0xff]
        %v517 = vld [vmem:[#allocation2 + $0x8] sm:$0xff]
        %vm518 = vcmask 523264
        %v520 = vsel %vm518, %v325, 0
        %v523 = vsel %vm518, %v326, 0
        %525 = vmatprep.subr.mxu0 0.0
        %526 = vmatpush1.xpose.msra.mxu0 0.0
        %527 = vmatprep.subr.mxu0 0.0
        %528 = vmatpush1.xpose.msra.mxu0 0.0
        %529 = vmatprep.subr.mxu0 0.0
        %530 = vmatpush1.xpose.msra.mxu0 0.0
        %531 = vmatprep.subr.mxu0 0.0
        %532 = vmatpush1.xpose.msra.mxu0 0.0
        %533 = vmatprep.subr.mxu0 0.0
        %534 = vmatpush1.xpose.msra.mxu0 0.0
        %535 = vmatprep.subr.mxu0 0.0
        %536 = vmatpush1.xpose.msra.mxu0 0.0
        %537 = vmatprep.subr.mxu0 0.0
        %538 = vmatpush1.xpose.msra.mxu0 0.0
        %539 = vmatprep.subr.mxu0 0.0
        %540 = vmatpush1.xpose.msra.mxu0 0.0
        %541 = vmatprep.subr.mxu0 0.0
        %542 = vmatpush1.xpose.msra.mxu0 0.0
        %543 = vmatprep.subr.mxu0 0.0
        %544 = vmatpush1.xpose.msra.mxu0 0.0
        %545 = vmatprep.subr.mxu0 0.0
        %546 = vmatpush1.xpose.msra.mxu0 0.0
        %547 = vmatprep.subr.mxu0 0.0
        %548 = vmatpush1.xpose.msra.mxu0 0.0
        %549 = vmatprep.subr.mxu0 0.0
        %550 = vmatpush1.xpose.msra.mxu0 0.0
        %551 = vmatprep.subr.mxu0 0.0
        %552 = vmatpush1.xpose.msra.mxu0 0.0
        %553 = vmatprep.subr.mxu0 0.0
        %554 = vmatpush1.xpose.msra.mxu0 %v523
        %555 = vmatprep.subr.mxu0 0.0
        %556 = vmatpush1.xpose.msra.mxu0 %v520
        %557 = vmatprep.subr.mxu0 0.0
        %558 = vmatpush2.xpose.msra.mxu0 0.0
        %559 = vmatprep.subr.mxu0 0.0
        %560 = vmatpush2.xpose.msra.mxu0 0.0
        %561 = vmatprep.subr.mxu0 0.0
        %562 = vmatpush2.xpose.msra.mxu0 0.0
        %563 = vmatprep.subr.mxu0 0.0
        %564 = vmatpush2.xpose.msra.mxu0 0.0
        %565 = vmatprep.subr.mxu0 0.0
        %566 = vmatpush2.xpose.msra.mxu0 0.0
        %567 = vmatprep.subr.mxu0 0.0
        %568 = vmatpush2.xpose.msra.mxu0 0.0
        %569 = vmatprep.subr.mxu0 0.0
        %570 = vmatpush2.xpose.msra.mxu0 0.0
        %571 = vmatprep.subr.mxu0 0.0
        %572 = vmatpush2.xpose.msra.mxu0 0.0
        %573 = vmatprep.subr.mxu0 0.0
        %574 = vmatpush2.xpose.msra.mxu0 0.0
        %575 = vmatprep.subr.mxu0 0.0
        %576 = vmatpush2.xpose.msra.mxu0 0.0
        %577 = vmatprep.subr.mxu0 0.0
        %578 = vmatpush2.xpose.msra.mxu0 0.0
        %579 = vmatprep.subr.mxu0 0.0
        %580 = vmatpush2.xpose.msra.mxu0 0.0
        %581 = vmatprep.subr.mxu0 0.0
        %582 = vmatpush2.xpose.msra.mxu0 0.0
        %583 = vmatprep.subr.mxu0 0.0
        %584 = vmatpush2.xpose.msra.mxu0 0.0
        %585 = vmatprep.subr.mxu0 0.0
        %586 = vmatpush2.xpose.msra.mxu0 0.0
        %587 = vmatprep.subr.mxu0 0.0
        %588 = vmatpush2.xpose.msra.mxu0 0.0
        %589 = vmatprep.mubr.f32.mxu0 0.0
        %590 = vmatmul.mubr.f32.gmra.mxu0 %v520
        %v591 = vpop.f32.mrf.mxu0
        %v592 = vadd.f32 0.0, %v591
        %v593 = vpop.f32.mrf.mxu0
        %594 = vmatprep.mubr.f32.mxu0 0.0
        %595 = vmatmul.mubr.f32.gmra.mxu0 %v523
        %v596 = vpop.f32.mrf.mxu0
        %v597 = vadd.f32 0.0, %v596
        %v598 = vpop.f32.mrf.mxu0
        %599 = vdwg.mxu0
        %v600 = vadd.f32 %v516, %v592
        %v601 = vadd.f32 %v517, %v597
        %602 = vst.msk [vmem:[#allocation2] sm:$0xff] %vm357, %v600
        %603 = vst.msk [vmem:[#allocation2 + $0x8] sm:$0xff] %vm357, %v601
        // Predicated region
        $region37: #{tpu_custom_call.1} parent=31 // pred_check
          %p604 = pneg %p318
        $region38: #{tpu_custom_call.1} parent=31 // pred_check_branch
          %606 = sbr.rel (%p604) target = $region40
        $region39: #{tpu_custom_call.1} parent=31 // pred_region
          %v607 = vld [vmem:[#allocation2] sm:$0xff]
          %v608 = vld [vmem:[#allocation2 + $0x8] sm:$0xff]
          %v609 = vsel %vm357, %v607, -inf
          %610 = vmax.xlane.f32.xlu0 %v609
          %v611 = vpop.xlane.xlu0 %610
          %v612 = vsel %vm357, %v608, -inf
          %613 = vmax.xlane.f32.xlu0 %v612
          %v614 = vpop.xlane.xlu0 %613
          %v615 = vsub.f32 %v611, %v607
          %v616 = vsub.f32 %v614, %v608
          %v617 = vsel %vm357, %v615, -inf
          %618 = vmax.xlane.f32.xlu0 %v617
          %v619 = vpop.xlane.xlu0 %618
          %v620 = vsel %vm357, %v616, -inf
          %621 = vmax.xlane.f32.xlu0 %v620
          %v622 = vpop.xlane.xlu0 %621
          %v623 = vsub.f32 %v615, %v619
          %v624 = vsub.f32 %v616, %v622
          %v625 = vmul.f32 %v623, 1.442695
          %v626 = vpow.pop %v625
          %v627 = vmul.f32 %v624, 1.442695
          %v628 = vpow.pop %v627
          %v629 = vsel %vm357, %v626, 0.0
          %630 = vadd.xlane.f32.xlu0 %v629
          %v631 = vpop.xlane.xlu0 %630
          %v632 = vsel %vm357, %v628, 0.0
          %633 = vadd.xlane.f32.xlu0 %v632
          %v634 = vpop.xlane.xlu0 %633
          %v635 = vrcp.pop %v631
          %v636 = vmul.f32 %v626, %v635
          %v637 = vrcp.pop %v634
          %v638 = vmul.f32 %v628, %v637
          %639 = vst.msk [vmem:[%s298] sm:$0xff] %vm357, %v636
          %640 = vst.msk [vmem:[%s298 + $0x8] sm:$0xff] %vm357, %v638
        $region40: #{tpu_custom_call.1} parent=31 // pred_fallthru
          _
        %s641 = sand.u32 %s116, 1
        %s642 = scalar_lea.sflag [#allocation4], %s641
        %s643 = sand.u32 %s116, 1
        %s644 = scalar_lea.vmem [#allocation3], %s643
        %s645 = smul.u32 8, %s29
        %p646 = scmp.lt.s32.totalorder %s28, 1
        %s647 = scalar_select %p646, %s28, 1
        %p648 = scmp.lt.s32.totalorder %s645, 7
        %s649 = scalar_select %p648, %s645, 7
        %s650 = smul.addr %s647, 8
        %s651 = sadd.s32 %s649, %s650
        %s652 = smul.addr %s651, 4
        %s653 = scalar_lea.vmem %s4, %s652
        %s654 = sand.u32 %s24, 1
        %s655 = scalar_lea.sflag [#allocation6], %s654
        %s656 = sand.u32 %s172, 1
        %s657 = smul.addr %s656, 8
        %s658 = scalar_lea.vmem [#allocation5], %s657
        %s659 = sand.u32 %s24, 1
        %s660 = scalar_lea.sflag [#allocation6], %s659
        %s661 = sand.u32 %s198, 1
        %s662 = smul.addr %s661, 16
        %s663 = scalar_lea.vmem [#allocation7], %s662
        // Predicated region
        $region41: #{tpu_custom_call.1} parent=31 // pred_check
          %p664 = pneg %p126
        $region42: #{tpu_custom_call.1} parent=31 // pred_check_branch
          %666 = sbr.rel (%p664) target = $region44
        $region43: #{tpu_custom_call.1} parent=31 // pred_region
          %s668 = ssub.s32 16, 16
          %669 = vsyncadd %s642, %s668
          %s670 = sadd.s32 %s29, %s28
          %s671 = smul.addr %s670, 16
          %s672 = scalar_lea.hbm %s3, %s671
          %s674 = sshll.u32 %s644, 4
          %s675 = int_to_ptr.vmem [resolvable:$true] %s674
          %677 = dma.vmem_to_hbm [thread:$0]  %s675, 16, %s672, %s642
        $region44: #{tpu_custom_call.1} parent=31 // pred_fallthru
          _
        // Predicated region
        $region45: #{tpu_custom_call.1} parent=31 // pred_check
          %p678 = pneg %p154
        $region46: #{tpu_custom_call.1} parent=31 // pred_check_branch
          %680 = sbr.rel (%p678) target = $region48
        $region47: #{tpu_custom_call.1} parent=31 // pred_region
          %s681 = smul.u32 8, %s29
        $region48: #{tpu_custom_call.1} parent=31 // pred_fallthru
          _
        // Predicated region
        $region49: #{tpu_custom_call.1} parent=31 // pred_check
          %p682 = pneg %p182
        $region50: #{tpu_custom_call.1} parent=31 // pred_check_branch
          %684 = sbr.rel (%p682) target = $region52
        $region51: #{tpu_custom_call.1} parent=31 // pred_region
          %s686 = ssub.s32 128, 128
          %687 = vsyncadd %s655, %s686
          %s688 = smul.addr %s28, 2
          %s689 = sadd.s32 %s29, %s688
          %s690 = smul.addr %s689, 64
          %s691 = scalar_lea.hbm %s5, %s690
          %s692 = sshll.u32 %s658, 4
          %s693 = int_to_ptr.vmem [resolvable:$true] %s692
          %698 = dma.vmem_to_hbm [thread:$0]  %s693, 128, %s691, %s655, 64, 64, 4
        $region52: #{tpu_custom_call.1} parent=31 // pred_fallthru
          _
        // Predicated region
        $region53: #{tpu_custom_call.1} parent=31 // pred_check
          %p699 = pneg %p208
        $region54: #{tpu_custom_call.1} parent=31 // pred_check_branch
          %701 = sbr.rel (%p699) target = $region56
        $region55: #{tpu_custom_call.1} parent=31 // pred_region
          %s703 = ssub.s32 256, 256
          %704 = vsyncadd %s660, %s703
          %s705 = smul.addr %s28, 2
          %s706 = smul.addr %s705, 128
          %s707 = scalar_lea.hbm %s6, %s706
          %s708 = sshll.u32 %s663, 4
          %s709 = int_to_ptr.vmem [resolvable:$true] %s708
          %714 = dma.vmem_to_hbm [thread:$0]  %s709, 256, %s707, %s660, 128, 128, 8
        $region56: #{tpu_custom_call.1} parent=31 // pred_fallthru
          _
      $region32: #{tpu_custom_call.1} parent=5 // pred_fallthru
        _
      %p715 = scmp.le.s32.totalorder 2, %s19
      // Predicated region
      $region57: #{tpu_custom_call.1} parent=5 // pred_check
        %p716 = pneg %p715
      $region58: #{tpu_custom_call.1} parent=5 // pred_check_branch
        %718 = sbr.rel (%p716) target = $region60
      $region59: #{tpu_custom_call.1} parent=5 // pred_region
        %s719 = ssub.s32 %s19, 2
        // Predicated region
        $region61: #{tpu_custom_call.1} parent=59 // pred_check
          %p720 = pneg %p132
        $region62: #{tpu_custom_call.1} parent=59 // pred_check_branch
          %722 = sbr.rel (%p720) target = $region64
        $region63: #{tpu_custom_call.1} parent=59 // pred_region
          %s723 = sand.u32 %s117, 1
          %s724 = scalar_lea.sflag [#allocation4], %s723
          %s725 = sand.u32 %s117, 1
          %s726 = scalar_lea.vmem [#allocation3], %s725
          %727 = dma.done %s724, 16
        $region64: #{tpu_custom_call.1} parent=59 // pred_fallthru
          _
        // Predicated region
        $region65: #{tpu_custom_call.1} parent=59 // pred_check
          %p728 = pneg %p160
        $region66: #{tpu_custom_call.1} parent=59 // pred_check_branch
          %730 = sbr.rel (%p728) target = $region68
        $region67: #{tpu_custom_call.1} parent=59 // pred_region
          %s731 = smul.u32 8, %s31
          %p732 = scmp.lt.s32.totalorder %s30, 1
          %s733 = scalar_select %p732, %s30, 1
          %p734 = scmp.lt.s32.totalorder %s731, 7
          %s735 = scalar_select %p734, %s731, 7
          %s736 = smul.addr %s733, 8
          %s737 = sadd.s32 %s735, %s736
          %s738 = smul.addr %s737, 4
          %s739 = scalar_lea.vmem %s4, %s738
        $region68: #{tpu_custom_call.1} parent=59 // pred_fallthru
          _
        // Predicated region
        $region69: #{tpu_custom_call.1} parent=59 // pred_check
          %p740 = pneg %p188
        $region70: #{tpu_custom_call.1} parent=59 // pred_check_branch
          %742 = sbr.rel (%p740) target = $region72
        $region71: #{tpu_custom_call.1} parent=59 // pred_region
          %s743 = sand.u32 %s25, 1
          %s744 = scalar_lea.sflag [#allocation6], %s743
          %s745 = sand.u32 %s173, 1
          %s746 = smul.addr %s745, 8
          %s747 = scalar_lea.vmem [#allocation5], %s746
          %748 = dma.done %s744, 128
        $region72: #{tpu_custom_call.1} parent=59 // pred_fallthru
          _
        // Predicated region
        $region73: #{tpu_custom_call.1} parent=59 // pred_check
          %p749 = pneg %p214
        $region74: #{tpu_custom_call.1} parent=59 // pred_check_branch
          %751 = sbr.rel (%p749) target = $region76
        $region75: #{tpu_custom_call.1} parent=59 // pred_region
          %s752 = sand.u32 %s25, 1
          %s753 = scalar_lea.sflag [#allocation6], %s752
          %s754 = sand.u32 %s199, 1
          %s755 = smul.addr %s754, 16
          %s756 = scalar_lea.vmem [#allocation7], %s755
          %757 = dma.done %s753, 256
        $region76: #{tpu_custom_call.1} parent=59 // pred_fallthru
          _
      $region60: #{tpu_custom_call.1} parent=5 // pred_fallthru
        _
    $region6: #{tpu_custom_call.1} parent=1 // loop_footer
      %s23 = sadd.s32 1, %s19
    $region7: #{tpu_custom_call.1} parent=1 // loop_footer_branch
      %18 = sbr.rel target = $region3
    $region8: #{tpu_custom_call.1} parent=1 // loop_exit
      _
    %758 = vsyncpa [#allocation4], 1
    %s759 = scalar_lea.sflag [#allocation4], 1
    %760 = vsyncpa %s759, 1
    %761 = vsyncpa [#allocation6], 1
    %s762 = scalar_lea.sflag [#allocation6], 1
    %763 = vsyncpa %s762, 1

</llo_original>
